<compile_context>
chip_gen: v7x
topology: tpu7x:2x2x1
jax: 0.10.0
libtpu: 0.0.40
codegen_flags: <defaults>
</compile_context>

<pallas_src>
import functools

import numpy as np
import jax
import jax.numpy as jnp
from jax.experimental import pallas as pl
from jax.experimental.pallas import tpu as pltpu


def _bilinear_matrix(out_size: int, in_size: int) -> np.ndarray:
    """Row-stochastic (out, in) matrix implementing 1-D bilinear resize with
    PyTorch F.interpolate(..., mode='bilinear', align_corners=True) semantics
    (matches the UP module's defaults)."""
    A = np.zeros((out_size, in_size), dtype=np.float32)
    for i in range(out_size):
        src = 0.0 if out_size == 1 else i * (in_size - 1) / (out_size - 1)
        lo = int(np.floor(src))
        hi = min(lo + 1, in_size - 1)
        frac = src - lo
        A[i, lo] += 1.0 - frac
        A[i, hi] += frac
    return A


def up_kernel(x_ref, y_ref, w_ref, b_ref, mt_ref, o_ref):
    # x_ref:  (N*Cin,  H*W)   f32   low-level feature; rows=(n,cin), lanes=H*W
    # y_ref:  (N*Cout, Hy*Wy) f32   high-level feature; rows=(n,cout)
    # w_ref:  (N*Cout, N*Cin) bf16  block-diag kron(I_N, conv_w.T * bn_scale)
    # b_ref:  (N*Cout, 1)     f32   folded BN bias (beta - mean*scale), tiled
    # mt_ref: (Hy*Wy,  H*W)   bf16  kron(A_h, A_w)^T bilinear resize matrix
    # o_ref:  (N*Cout, H*W)   f32
    xb = x_ref[...].astype(jnp.bfloat16)                                   # (N*Cin, HW)
    conv = jnp.dot(w_ref[...], xb, preferred_element_type=jnp.float32)     # (N*Cout, HW)
    conv = jnp.maximum(conv + b_ref[...], 0.0)                             # bias + ReLU, f32
    yb = y_ref[...].astype(jnp.bfloat16)                                   # (N*Cout, HyWy)
    y_up = jnp.dot(yb, mt_ref[...], preferred_element_type=jnp.float32)    # (N*Cout, HW)
    o_ref[...] = (y_up + conv).astype(o_ref.dtype)


@functools.partial(jax.jit, static_argnames=("eps",))
def up_forward(x_nchw, y_nchw, w_conv, gamma, beta, run_mean, run_var, eps=1e-5):
    """Pallas implementation of UP.forward(x, y). Inputs/outputs are NCHW f32."""
    N, Cin, H, W = x_nchw.shape
    Ny, Cout, Hy, Wy = y_nchw.shape
    assert Ny == N

    # ---- free contiguous reshapes: batch -> rows, spatial -> lanes ----
    x2d = x_nchw.reshape(N * Cin, H * W)
    y2d = y_nchw.reshape(N * Cout, Hy * Wy)

    # ---- fold inference BatchNorm into the 1x1 conv; block-diag over batch ----
    scale = gamma / jnp.sqrt(run_var + eps)                              # (Cout,)
    wt = (w_conv.astype(jnp.float32) * scale[None, :]).T                 # (Cout, Cin)
    w_bd = jnp.kron(jnp.eye(N, dtype=jnp.float32), wt).astype(jnp.bfloat16)  # (N*Cout, N*Cin)
    bias = (beta - run_mean * scale).astype(jnp.float32)                 # (Cout,)
    b2d = jnp.tile(bias, N).reshape(N * Cout, 1)                         # (N*Cout, 1)

    # ---- bilinear resize as one lane-dense matmul; numpy at trace time ----
    mt = jnp.asarray(
        np.kron(_bilinear_matrix(H, Hy), _bilinear_matrix(W, Wy)).T,
        dtype=jnp.bfloat16,
    )                                                                    # (Hy*Wy, H*W)

    vmem = pl.BlockSpec(memory_space=pltpu.MemorySpace.VMEM)
    out2d = pl.pallas_call(
        up_kernel,
        out_shape=jax.ShapeDtypeStruct((N * Cout, H * W), jnp.float32),
        in_specs=[vmem, vmem, vmem, vmem, vmem],
        out_specs=vmem,
    )(x2d, y2d, w_bd, b2d, mt)

    return out2d.reshape(N, Cout, H, W)


def up_reference(x_nchw, y_nchw, w_conv, gamma, beta, run_mean, run_var, eps=1e-5):
    """Pure-JAX f32 reference mirroring the PyTorch module (unfused, NCHW)."""
    N, Cin, H, W = x_nchw.shape
    _, Cout, Hy, Wy = y_nchw.shape
    # 1x1 conv (no bias) + BatchNorm (inference) + ReLU
    conv = jnp.einsum("io,nihw->nohw", w_conv, x_nchw)
    scale = gamma / jnp.sqrt(run_var + eps)
    bias = beta - run_mean * scale
    conv = jnp.maximum(conv * scale[None, :, None, None] + bias[None, :, None, None], 0.0)
    # bilinear upsample, align_corners=True
    A_h = jnp.asarray(_bilinear_matrix(H, Hy))
    A_w = jnp.asarray(_bilinear_matrix(W, Wy))
    y_up = jnp.einsum("Hh,nchw,Ww->ncHW", A_h, y_nchw, A_w)
    return y_up + conv


if __name__ == "__main__":
    # Small shapes consistent with the module:
    #   x (low-level feature):  (N, in_channels,  H,  W ) = (2, 8, 16, 16)
    #   y (high-level feature): (N, out_channels, Hy, Wy) = (2, 4,  8,  8)
    N, Cin, Cout = 2, 8, 4
    H = W = 16
    Hy = Wy = 8

    key = jax.random.PRNGKey(0)
    kx, ky, kw, kg, kb, km, kv = jax.random.split(key, 7)

    x = jax.random.normal(kx, (N, Cin, H, W), dtype=jnp.float32)
    y = jax.random.normal(ky, (N, Cout, Hy, Wy), dtype=jnp.float32)

    # Deterministic synthetic parameters for ConvBnRelu(in=Cin, out=Cout, k=1):
    # 1x1 conv weight stored as (Cin, Cout); BatchNorm2d inference params.
    w_conv = jax.random.normal(kw, (Cin, Cout), dtype=jnp.float32) * 0.1
    gamma = 1.0 + 0.1 * jax.random.normal(kg, (Cout,), dtype=jnp.float32)
    beta = 0.1 * jax.random.normal(kb, (Cout,), dtype=jnp.float32)
    run_mean = 0.1 * jax.random.normal(km, (Cout,), dtype=jnp.float32)
    run_var = jnp.abs(jax.random.normal(kv, (Cout,), dtype=jnp.float32)) + 0.5

    out = up_forward(x, y, w_conv, gamma, beta, run_mean, run_var)
    out = jax.block_until_ready(out)

    ref = up_reference(x, y, w_conv, gamma, beta, run_mean, run_var)
    assert out.shape == (N, Cout, H, W)
    # Tolerance accounts for bf16 MXU operands (~2^-8 relative per term, f32
    # accumulation): expected error is ~1e-2 absolute on O(1) activations,
    # while any indexing / BN-folding / resize-matrix bug produces O(1) errors.
    np.testing.assert_allclose(np.asarray(out), np.asarray(ref), rtol=2e-2, atol=5e-2)

    print("KERNEL_OK")
</pallas_src>

<mosaic_0001>
module attributes {stable_mosaic.version = 11 : i64} {
  func.func @up_kernel(%arg0: memref<16x256xf32, #tpu.memory_space<vmem>>, %arg1: memref<8x64xf32, #tpu.memory_space<vmem>>, %arg2: memref<8x16xbf16, #tpu.memory_space<vmem>>, %arg3: memref<8x1xf32, #tpu.memory_space<vmem>>, %arg4: memref<64x256xbf16, #tpu.memory_space<vmem>>, %arg5: memref<8x256xf32, #tpu.memory_space<vmem>>) attributes {dimension_semantics = [], scalar_prefetch = 0 : i64, scratch_operands = 0 : i64, tpu.core_type = #tpu.core_type<tc>} {
    %c0 = arith.constant 0 : index
    %c0_0 = arith.constant 0 : index
    %0 = vector.load %arg0[%c0, %c0_0] : memref<16x256xf32, #tpu.memory_space<vmem>>, vector<16x256xf32>
    %1 = arith.truncf %0 : vector<16x256xf32> to vector<16x256xbf16>
    %c0_1 = arith.constant 0 : index
    %c0_2 = arith.constant 0 : index
    %2 = vector.load %arg2[%c0_1, %c0_2] : memref<8x16xbf16, #tpu.memory_space<vmem>>, vector<8x16xbf16>
    %cst = arith.constant dense<0.000000e+00> : vector<8x256xf32>
    %3 = tpu.matmul %2, %1, %cst {dimension_numbers = #tpu.dot_dimension_numbers<[1], [0], [0], [1], [0, 0, 1, 1], [], []>} : vector<8x16xbf16>, vector<16x256xbf16>, vector<8x256xf32> -> vector<8x256xf32>
    %c0_3 = arith.constant 0 : index
    %c0_4 = arith.constant 0 : index
    %4 = vector.load %arg3[%c0_3, %c0_4] : memref<8x1xf32, #tpu.memory_space<vmem>>, vector<8x1xf32>
    %5 = vector.broadcast %4 : vector<8x1xf32> to vector<8x256xf32>
    %6 = arith.addf %3, %5 : vector<8x256xf32>
    %cst_5 = arith.constant 0.000000e+00 : f32
    %7 = vector.broadcast %cst_5 : f32 to vector<8x256xf32>
    %8 = arith.maximumf %6, %7 : vector<8x256xf32>
    %c0_6 = arith.constant 0 : index
    %c0_7 = arith.constant 0 : index
    %9 = vector.load %arg1[%c0_6, %c0_7] : memref<8x64xf32, #tpu.memory_space<vmem>>, vector<8x64xf32>
    %10 = arith.truncf %9 : vector<8x64xf32> to vector<8x64xbf16>
    %c0_8 = arith.constant 0 : index
    %c0_9 = arith.constant 0 : index
    %11 = vector.load %arg4[%c0_8, %c0_9] : memref<64x256xbf16, #tpu.memory_space<vmem>>, vector<64x256xbf16>
    %cst_10 = arith.constant dense<0.000000e+00> : vector<8x256xf32>
    %12 = tpu.matmul %10, %11, %cst_10 {dimension_numbers = #tpu.dot_dimension_numbers<[1], [0], [0], [1], [0, 0, 1, 1], [], []>} : vector<8x64xbf16>, vector<64x256xbf16>, vector<8x256xf32> -> vector<8x256xf32>
    %13 = arith.addf %12, %8 : vector<8x256xf32>
    %c0_11 = arith.constant 0 : index
    %c0_12 = arith.constant 0 : index
    %14 = vector.load %arg5[%c0_11, %c0_12] : memref<8x256xf32, #tpu.memory_space<vmem>>, vector<8x256xf32>
    tpu.vector_store %arg5[%c0_11, %c0_12], %13 {strides = array<i32>} : memref<8x256xf32, #tpu.memory_space<vmem>>, vector<8x256xf32>,
    return
  }
}

</mosaic_0001>

<llo_original>
// kernel: tile.8
$region0: #{tile.8}
  #allocation0 [shape = 's32[1]{0}', space=sflag, size = 0x4, scoped, tag = 'scoped memory for tile.8']
  %s0 = inlined_call_operand.vmem [shape: f32[4], index: 0, kind: input, shape index: {}]
  %s1 = inlined_call_operand.vmem [shape: f32[2,4], index: 1, kind: output, shape index: {}]
  // Predicated region
  $region2: #{tile.8} parent=0 // pred_check
    _
  $region3: #{tile.8} parent=0 // pred_check_branch
    %3 = sbr.rel (0) target = $region5
  $region4: #{tile.8} parent=0 // pred_region
    _
  $region5: #{tile.8} parent=0 // pred_fallthru
    _
  %v4 = vld [vmem:[%s0] ss:$0 sm:$0xff]
  %5 = vst [vmem:[%s1] sm:$0x3] %v4

// kernel: tile.0
$region0: #{tile.0}
  %s0 = inlined_call_operand.vmem [shape: f32[2,4], index: 0, kind: input, shape index: {}]
  %s1 = inlined_call_operand.vmem [shape: f32[8,1], index: 1, kind: output, shape index: {}]
  $region1: #{tile.0} parent=0
    #allocation0 [shape = 'u8[4096]{0}', space=vmem, size = 0x1000, scoped, tag = 'scoped mem for input reshape']
    %s3 = sshllo.u32 0, 2
    %v4 = vld [vmem:[%s0] sm:%s3]
    %5 = vst [vmem:[#allocation0] sm:%s3] %v4
    %v6 = vld [vmem:[#allocation0] sm:$0x3]
    %vm7 = vcmask 7168
    %8 = vst.msk [vmem:[%s1] ss:$4 sm:$0x3] %vm7, %v6
    %v9 = vld [vmem:[#allocation0] sm:$0x3]
    %10 = vrot.lane.b32.xlu0 %v9, 127
    %v11 = vpop.permute.xlu0 %10
    %vm12 = vcmask 7168
    %s13 = scalar_lea.vmem %s1, 1
    %14 = vst.msk [vmem:[%s13] ss:$4 sm:$0x3] %vm12, %v11
    %v15 = vld [vmem:[#allocation0] sm:$0x3]
    %16 = vrot.lane.b32.xlu0 %v15, 126
    %v17 = vpop.permute.xlu0 %16
    %vm18 = vcmask 7168
    %s19 = scalar_lea.vmem %s1, 2
    %20 = vst.msk [vmem:[%s19] ss:$4 sm:$0x3] %vm18, %v17
    %v21 = vld [vmem:[#allocation0] sm:$0x3]
    %22 = vrot.lane.b32.xlu0 %v21, 125
    %v23 = vpop.permute.xlu0 %22
    %vm24 = vcmask 7168
    %s25 = scalar_lea.vmem %s1, 3
    %26 = vst.msk [vmem:[%s25] ss:$4 sm:$0x3] %vm24, %v23

// kernel: up_forward.1
$region0: #{up_forward.1}
  #allocation0 [shape = 'u32[]', space=smem, size = 0x4, offset = 0x4, fixed_abs, tag = 'smem constant byte address 0x4 - core index']
  #allocation1 [shape = 'u32[144,128]{1,0:T(1,128)}', space=vmem, size = 0x12000, scoped, tag = 'internal scratch']
  %s0 = inlined_call_operand.vmem [shape: f32[16,256], index: 0, kind: input, shape index: {}]
  %s1 = inlined_call_operand.vmem [shape: f32[8,64], index: 1, kind: input, shape index: {}]
  %s2 = inlined_call_operand.vmem [shape: bf16[8,16], index: 2, kind: input, shape index: {}]
  %s3 = inlined_call_operand.vmem [shape: f32[8,1], index: 3, kind: input, shape index: {}]
  %s4 = inlined_call_operand.vmem [shape: bf16[64,256], index: 4, kind: input, shape index: {}]
  %s5 = inlined_call_operand.vmem [shape: f32[8,256], index: 5, kind: output, shape index: {}]
  %s6 = sld [smem:[#allocation0]]
  $region30: #{up_forward.1} parent=0
    _
  %s8 = ssub.s32 1, %s6
  %s9 = scalar_select 0, %s8, %s6
  // Predicated region
  $region2: #{up_forward.1} parent=0 // pred_check
    _
  $region3: #{up_forward.1} parent=0 // pred_check_branch
    %11 = sbr.rel (0) target = $region5
  $region4: #{up_forward.1} parent=0 // pred_region
    _
  $region5: #{up_forward.1} parent=0 // pred_fallthru
    _
  // Predicated region
  $region6: #{up_forward.1} parent=0 // pred_check
    _
  $region7: #{up_forward.1} parent=0 // pred_check_branch
    %13 = sbr.rel (0) target = $region9
  $region8: #{up_forward.1} parent=0 // pred_region
    _
  $region9: #{up_forward.1} parent=0 // pred_fallthru
    _
  // Predicated region
  $region10: #{up_forward.1} parent=0 // pred_check
    _
  $region11: #{up_forward.1} parent=0 // pred_check_branch
    %15 = sbr.rel (0) target = $region13
  $region12: #{up_forward.1} parent=0 // pred_region
    _
  $region13: #{up_forward.1} parent=0 // pred_fallthru
    _
  // Predicated region
  $region14: #{up_forward.1} parent=0 // pred_check
    _
  $region15: #{up_forward.1} parent=0 // pred_check_branch
    %17 = sbr.rel (0) target = $region17
  $region16: #{up_forward.1} parent=0 // pred_region
    _
  $region17: #{up_forward.1} parent=0 // pred_fallthru
    _
  // Predicated region
  $region18: #{up_forward.1} parent=0 // pred_check
    _
  $region19: #{up_forward.1} parent=0 // pred_check_branch
    %19 = sbr.rel (0) target = $region21
  $region20: #{up_forward.1} parent=0 // pred_region
    _
  $region21: #{up_forward.1} parent=0 // pred_fallthru
    _
  %v21 = vld [vmem:[%s0] sm:$0xff]
  %v22 = vld [vmem:[%s0 + $0x8] sm:$0xff]
  %v23 = vld [vmem:[%s0 + $0x10] sm:$0xff]
  %v24 = vld [vmem:[%s0 + $0x18] sm:$0xff]
  %v25 = vpack.c.bf16 %v23, %v21
  %v26 = vpack.c.bf16 %v24, %v22
  %v27 = vld [vmem:[%s2] sm:$0xf]
  %v28 = vld [vmem:[%s3] sm:$0xff]
  %30 = vset.pattern.permute.xlu0 0
  %31 = vperm.xlu0 %30, %v28
  %v32 = vpop.permute.xlu0 %31
  %vm34 = vcmask 130048
  %v36 = vsel %vm34, %v27, 0
  %38 = vmatprep.subr.bf16.mxu0 %v26
  %39 = vmatpush1.bf16.msra.mxu0 %v25
  %40 = vmatprep.subr.bf16.mxu0 0
  %41 = vmatpush1.bf16.msra.mxu0 0
  %42 = vmatprep.subr.bf16.mxu0 0
  %43 = vmatpush1.bf16.msra.mxu0 0
  %44 = vmatprep.subr.bf16.mxu0 0
  %45 = vmatpush1.bf16.msra.mxu0 0
  %46 = vmatprep.subr.bf16.mxu0 0
  %47 = vmatpush1.bf16.msra.mxu0 0
  %48 = vmatprep.subr.bf16.mxu0 0
  %49 = vmatpush1.bf16.msra.mxu0 0
  %50 = vmatprep.subr.bf16.mxu0 0
  %51 = vmatpush1.bf16.msra.mxu0 0
  %52 = vmatprep.subr.bf16.mxu0 0
  %53 = vmatpush1.bf16.msra.mxu0 0
  %54 = vmatprep.subr.bf16.mxu0 0
  %55 = vmatpush1.bf16.msra.mxu0 0
  %56 = vmatprep.subr.bf16.mxu0 0
  %57 = vmatpush1.bf16.msra.mxu0 0
  %58 = vmatprep.subr.bf16.mxu0 0
  %59 = vmatpush1.bf16.msra.mxu0 0
  %60 = vmatprep.subr.bf16.mxu0 0
  %61 = vmatpush1.bf16.msra.mxu0 0
  %62 = vmatprep.subr.bf16.mxu0 0
  %63 = vmatpush1.bf16.msra.mxu0 0
  %64 = vmatprep.subr.bf16.mxu0 0
  %65 = vmatpush1.bf16.msra.mxu0 0
  %66 = vmatprep.subr.bf16.mxu0 0
  %67 = vmatpush1.bf16.msra.mxu0 0
  %68 = vmatprep.subr.bf16.mxu0 0
  %69 = vmatpush1.bf16.msra.mxu0 0
  %70 = vmatprep.mubr.bf16.mxu0 0
  %71 = vmatmul.mubr.bf16.gmra.mrb[0].mxu0 %v36
  %v72 = vpop.f32.mrb[0].mxu0
  %v73 = vadd.f32 %v32, %v72
  %v74 = vpop.f32.mrb[0].mxu0
  %v75 = vadd.f32 %v32, %v74
  %v76 = vpop.f32.mrb[0].mxu0
  %v77 = vpop.f32.mrb[0].mxu0
  %78 = vdwg.mxu0
  %v79 = vmax.f32 %v73, 0.0
  %v80 = vmax.f32 %v75, 0.0
  %v81 = vld [vmem:[%s1] sm:$0xff]
  %v82 = vpack.c.bf16 %v81, %v81
  %v83 = vld [vmem:[%s4] sm:$0xff]
  %v84 = vld [vmem:[%s4 + $0x8] sm:$0xff]
  %v85 = vld [vmem:[%s4 + $0x10] sm:$0xff]
  %v86 = vld [vmem:[%s4 + $0x18] sm:$0xff]
  %v87 = vld [vmem:[%s4 + $0x20] sm:$0xff]
  %v88 = vld [vmem:[%s4 + $0x28] sm:$0xff]
  %v89 = vld [vmem:[%s4 + $0x30] sm:$0xff]
  %v90 = vld [vmem:[%s4 + $0x38] sm:$0xff]
  %v99 = vunpack.c.l.b16 %v83
  %v100 = vunpack.c.h.b16 %v83
  %v101 = vunpack.c.l.b16 %v84
  %v102 = vunpack.c.h.b16 %v84
  %v103 = vunpack.c.l.b16 %v85
  %v104 = vunpack.c.h.b16 %v85
  %v105 = vunpack.c.l.b16 %v86
  %v106 = vunpack.c.h.b16 %v86
  %v107 = vunpack.c.l.b16 %v87
  %v108 = vunpack.c.h.b16 %v87
  %v109 = vunpack.c.l.b16 %v88
  %v110 = vunpack.c.h.b16 %v88
  %v111 = vunpack.c.l.b16 %v89
  %v112 = vunpack.c.h.b16 %v89
  %v113 = vunpack.c.l.b16 %v90
  %v114 = vunpack.c.h.b16 %v90
  %v115 = vpack.c.b16 %v101, %v99
  %v116 = vpack.c.b16 %v102, %v100
  %v117 = vpack.c.b16 %v105, %v103
  %v118 = vpack.c.b16 %v106, %v104
  %v119 = vpack.c.b16 %v109, %v107
  %v120 = vpack.c.b16 %v110, %v108
  %v121 = vpack.c.b16 %v113, %v111
  %v122 = vpack.c.b16 %v114, %v112
  %vm131 = vcmask 523264
  %v133 = vsel %vm131, %v82, 0
  %135 = vmatprep.subr.bf16.mxu0 %v116
  %136 = vmatpush1.bf16.msra.mxu0 %v115
  %137 = vmatprep.subr.bf16.mxu0 %v118
  %138 = vmatpush1.bf16.msra.mxu0 %v117
  %139 = vmatprep.subr.bf16.mxu0 %v120
  %140 = vmatpush1.bf16.msra.mxu0 %v119
  %141 = vmatprep.subr.bf16.mxu0 %v122
  %142 = vmatpush1.bf16.msra.mxu0 %v121
  %143 = vmatprep.subr.bf16.mxu0 0
  %144 = vmatpush1.bf16.msra.mxu0 0
  %145 = vmatprep.subr.bf16.mxu0 0
  %146 = vmatpush1.bf16.msra.mxu0 0
  %147 = vmatprep.subr.bf16.mxu0 0
  %148 = vmatpush1.bf16.msra.mxu0 0
  %149 = vmatprep.subr.bf16.mxu0 0
  %150 = vmatpush1.bf16.msra.mxu0 0
  %151 = vmatprep.subr.bf16.mxu0 0
  %152 = vmatpush1.bf16.msra.mxu0 0
  %153 = vmatprep.subr.bf16.mxu0 0
  %154 = vmatpush1.bf16.msra.mxu0 0
  %155 = vmatprep.subr.bf16.mxu0 0
  %156 = vmatpush1.bf16.msra.mxu0 0
  %157 = vmatprep.subr.bf16.mxu0 0
  %158 = vmatpush1.bf16.msra.mxu0 0
  %159 = vmatprep.subr.bf16.mxu0 0
  %160 = vmatpush1.bf16.msra.mxu0 0
  %161 = vmatprep.subr.bf16.mxu0 0
  %162 = vmatpush1.bf16.msra.mxu0 0
  %163 = vmatprep.subr.bf16.mxu0 0
  %164 = vmatpush1.bf16.msra.mxu0 0
  %165 = vmatprep.subr.bf16.mxu0 0
  %166 = vmatpush1.bf16.msra.mxu0 0
  %167 = vmatprep.mubr.bf16.mxu0 0
  %168 = vmatmul.mubr.bf16.gmra.mrb[0].mxu0 %v133
  %v169 = vpop.f32.mrb[0].mxu0
  %v170 = vadd.f32 %v79, %v169
  %v171 = vpop.f32.mrb[0].mxu0
  %v172 = vadd.f32 %v80, %v171
  %v173 = vpop.f32.mrb[0].mxu0
  %v174 = vpop.f32.mrb[0].mxu0
  %175 = vdwg.mxu0
  %176 = vst [vmem:[%s5] sm:$0xff] %v170
  %177 = vst [vmem:[%s5 + $0x8] sm:$0xff] %v172
  // Predicated region
  $region22: #{up_forward.1} parent=0 // pred_check
    _
  $region23: #{up_forward.1} parent=0 // pred_check_branch
    %179 = sbr.rel (0) target = $region25
  $region24: #{up_forward.1} parent=0 // pred_region
    _
  $region25: #{up_forward.1} parent=0 // pred_fallthru
    _
  // Predicated region
  $region26: #{up_forward.1} parent=0 // pred_check
    _
  $region27: #{up_forward.1} parent=0 // pred_check_branch
    %181 = sbr.rel (0) target = $region29
  $region28: #{up_forward.1} parent=0 // pred_region
    _
  $region29: #{up_forward.1} parent=0 // pred_fallthru
    _

</llo_original>
